<compile_context>
chip_gen: v5e
topology: v5e:2x2
jax: 0.10.0
libtpu: 0.0.40
codegen_flags: <defaults>
</compile_context>

<pallas_src>
import functools

import jax
import jax.numpy as jnp
from jax.experimental import pallas as pl
from jax.experimental.pallas import tpu as pltpu


def _round_up(x, m):
    return ((x + m - 1) // m) * m


def _word_attn_kernel(x_ref, w_ref, b_ref, ctx_ref, o_ref, *, dot_dtype):
    # x_ref  : (TB, S, Dp)  batch tile of ip (f32)
    # w_ref  : (Dp, Dp)     linear weight, pre-transposed (so we compute x @ W)
    # b_ref  : (1, Dp)      linear bias
    # ctx_ref: (1, Dp)      context vector (row layout)
    # o_ref  : (TB, Dp)     sentence embeddings for this tile
    tb, s, dp = x_ref.shape
    x = x_ref[...]                                        # (TB, S, Dp) f32

    # Linear + tanh: one big MXU matmul over all TB*S rows, f32 accumulation.
    x2 = x.reshape(tb * s, dp)
    h = jnp.dot(x2.astype(dot_dtype), w_ref[...],
                preferred_element_type=jnp.float32)       # (TB*S, Dp)
    h = jnp.tanh(h + b_ref[...])                          # (TB*S, Dp) f32
    h = h.reshape(tb, s, dp)

    # Context scores: VPU multiply + lane reduce (avoids an N=1 MXU matmul).
    scores = jnp.sum(h * ctx_ref[...], axis=-1)           # (TB, S)

    # Softmax over the word (S) axis.
    m = jnp.max(scores, axis=-1, keepdims=True)
    e = jnp.exp(scores - m)
    attn = e * pl.reciprocal(jnp.sum(e, axis=-1, keepdims=True), approx=False)

    # Attention-weighted word sum: VPU multiply + sublane reduce
    # (avoids an M=1 MXU matmul and the attn transpose). Kept in f32.
    out = jnp.sum(attn[:, :, None] * x, axis=1)           # (TB, Dp)

    o_ref[...] = out.astype(o_ref.dtype)


def _pick_block_b(batch, seq, d_pad, in_itemsize):
    """Batch-tile size: multiple of 8, enough matmul rows to amortize grid
    overhead, and small enough that the double-buffered ip tile stays well
    inside the scoped-VMEM budget on every generation (incl. v7x's 64 MiB)."""
    b_pad8 = _round_up(batch, 8)
    tb = 8
    while tb * seq < 256 and tb < b_pad8:
        tb += 8
    tb = min(tb, b_pad8)
    budget = 8 * 1024 * 1024  # bytes for the double-buffered ip tile
    while tb > 8 and 2 * tb * seq * d_pad * in_itemsize > budget:
        tb -= 8
    return tb


def word_attn(ip, weight_t, bias, context, *, block_b=None, dot_dtype=jnp.bfloat16):
    """ip: (B, S, D); weight_t: (D, D) pre-transposed; bias: (D,); context: (D, 1)."""
    B, S, D = ip.shape
    d_pad = _round_up(D, 128)

    tb = block_b if block_b is not None else _pick_block_b(
        B, S, d_pad, ip.dtype.itemsize)
    b_pad = _round_up(B, tb)

    # Zero-pad: padded feature lanes and padded batch rows contribute nothing
    # (pad weight/bias/context columns are zero -> padded h lanes are tanh(0)=0
    #  and padded ctx lanes are 0 -> scores unchanged; padded ip rows are zero).
    ip_p = jnp.pad(ip, ((0, b_pad - B), (0, 0), (0, d_pad - D)))
    w_p = jnp.pad(weight_t, ((0, d_pad - D), (0, d_pad - D))).astype(dot_dtype)
    b_p = jnp.pad(bias, (0, d_pad - D)).reshape(1, d_pad).astype(jnp.float32)
    ctx_p = jnp.pad(context.reshape(-1), (0, d_pad - D)).reshape(1, d_pad)
    ctx_p = ctx_p.astype(jnp.float32)

    kernel = functools.partial(_word_attn_kernel, dot_dtype=dot_dtype)

    out = pl.pallas_call(
        kernel,
        out_shape=jax.ShapeDtypeStruct((b_pad, d_pad), ip.dtype),
        grid_spec=pltpu.PrefetchScalarGridSpec(
            num_scalar_prefetch=0,
            grid=(b_pad // tb,),
            in_specs=[
                pl.BlockSpec((tb, S, d_pad), lambda b: (b, 0, 0)),  # ip batch tile
                pl.BlockSpec((d_pad, d_pad), lambda b: (0, 0)),     # weight (resident)
                pl.BlockSpec((1, d_pad), lambda b: (0, 0)),         # bias
                pl.BlockSpec((1, d_pad), lambda b: (0, 0)),         # context
            ],
            out_specs=pl.BlockSpec((tb, d_pad), lambda b: (b, 0)),
        ),
        compiler_params=pltpu.CompilerParams(
            dimension_semantics=("parallel",),
        ),
    )(ip_p, w_p, b_p, ctx_p)

    return out[:B, :D]


def word_attn_ref(ip, weight_t, bias, context):
    """Pure-JAX reference matching the PyTorch forward (all f32)."""
    h = jnp.tanh(jnp.einsum("bsd,de->bse", ip, weight_t) + bias)
    scores = jnp.einsum("bsd,do->bso", h, context)[..., 0]   # (B, S)
    attn = jax.nn.softmax(scores, axis=1)                    # softmax over dim=1
    return jnp.einsum("bs,bsd->bd", attn, ip)                # (B, D)


if __name__ == "__main__":
    # Small shapes: batch=2, seq=8, hidden(input_dim)=32
    B, S, D = 2, 8, 32
    key = jax.random.PRNGKey(0)
    k_ip, k_w, k_b, k_ctx = jax.random.split(key, 4)

    ip = jax.random.normal(k_ip, (B, S, D), dtype=jnp.float32)

    # nn.Linear(D, D): weight (D, D), bias (D,) -- init uniform(-1/sqrt(D), 1/sqrt(D))
    bound = 1.0 / (D ** 0.5)
    weight = jax.random.uniform(k_w, (D, D), minval=-bound, maxval=bound,
                                dtype=jnp.float32)
    bias = jax.random.uniform(k_b, (D,), minval=-bound, maxval=bound,
                              dtype=jnp.float32)
    weight_t = weight.T  # pre-transpose so the kernel does x @ W_t

    # context parameter: normal(mean=0.0, std=0.05), shape (D, 1)
    context = 0.05 * jax.random.normal(k_ctx, (D, 1), dtype=jnp.float32)

    ref = word_attn_ref(ip, weight_t, bias, context)

    # Exact-precision path (f32 matmul inputs): tight check against reference.
    out_f32 = word_attn(ip, weight_t, bias, context, dot_dtype=jnp.float32)
    out_f32 = jax.block_until_ready(out_f32)
    assert out_f32.shape == (B, D), out_f32.shape
    assert jnp.allclose(out_f32, ref, atol=1e-5, rtol=1e-5), \
        jnp.max(jnp.abs(out_f32 - ref))

    # Default (bf16 matmul inputs, f32 accumulation): looser tolerance.
    out_bf16 = word_attn(ip, weight_t, bias, context)
    out_bf16 = jax.block_until_ready(out_bf16)
    assert out_bf16.shape == (B, D), out_bf16.shape
    assert jnp.allclose(out_bf16, ref, atol=1e-2, rtol=1e-2), \
        jnp.max(jnp.abs(out_bf16 - ref))

    print("KERNEL_OK")
</pallas_src>

<mosaic_0001>
module attributes {stable_mosaic.version = 11 : i64} {
  func.func @_word_attn_kernel(%arg0: i32, %arg1: memref<8x8x128xf32, #tpu.memory_space<vmem>>, %arg2: memref<128x128xf32, #tpu.memory_space<vmem>>, %arg3: memref<1x128xf32, #tpu.memory_space<vmem>>, %arg4: memref<1x128xf32, #tpu.memory_space<vmem>>, %arg5: memref<8x128xf32, #tpu.memory_space<vmem>>) attributes {dimension_semantics = [#tpu.dimension_semantics<parallel>], iteration_bounds = array<i64: 1>, scalar_prefetch = 0 : i64, scratch_operands = 0 : i64, tpu.core_type = #tpu.core_type<tc>, window_params = [{transform_indices = @transform_0, window_bounds = array<i64: 8, 8, 128>}, {pipeline_mode = #tpu.pipeline_mode<synchronous>, transform_indices = @transform_1, window_bounds = array<i64: 128, 128>}, {pipeline_mode = #tpu.pipeline_mode<synchronous>, transform_indices = @transform_2, window_bounds = array<i64: 1, 128>}, {pipeline_mode = #tpu.pipeline_mode<synchronous>, transform_indices = @transform_3, window_bounds = array<i64: 1, 128>}, {transform_indices = @transform_4, window_bounds = array<i64: 8, 128>}]} {
    %c0 = arith.constant 0 : index
    %c0_0 = arith.constant 0 : index
    %c0_1 = arith.constant 0 : index
    %0 = vector.load %arg1[%c0, %c0_0, %c0_1] : memref<8x8x128xf32, #tpu.memory_space<vmem>>, vector<8x8x128xf32>
    %1 = vector.shape_cast %0 : vector<8x8x128xf32> to vector<64x128xf32>
    %c0_2 = arith.constant 0 : index
    %c0_3 = arith.constant 0 : index
    %2 = vector.load %arg2[%c0_2, %c0_3] : memref<128x128xf32, #tpu.memory_space<vmem>>, vector<128x128xf32>
    %cst = arith.constant dense<0.000000e+00> : vector<64x128xf32>
    %3 = tpu.matmul %1, %2, %cst {dimension_numbers = #tpu.dot_dimension_numbers<[1], [0], [0], [1], [0, 0, 1, 1], [], []>} : vector<64x128xf32>, vector<128x128xf32>, vector<64x128xf32> -> vector<64x128xf32>
    %c0_4 = arith.constant 0 : index
    %c0_5 = arith.constant 0 : index
    %4 = vector.load %arg3[%c0_4, %c0_5] : memref<1x128xf32, #tpu.memory_space<vmem>>, vector<1x128xf32>
    %5 = vector.broadcast %4 : vector<1x128xf32> to vector<64x128xf32>
    %6 = arith.addf %3, %5 : vector<64x128xf32>
    %7 = math.tanh %6 : vector<64x128xf32>
    %8 = vector.shape_cast %7 : vector<64x128xf32> to vector<8x8x128xf32>
    %c0_6 = arith.constant 0 : index
    %c0_7 = arith.constant 0 : index
    %9 = vector.load %arg4[%c0_6, %c0_7] : memref<1x128xf32, #tpu.memory_space<vmem>>, vector<1x128xf32>
    %10 = vector.shape_cast %9 : vector<1x128xf32> to vector<1x1x128xf32>
    %11 = vector.broadcast %10 : vector<1x1x128xf32> to vector<8x8x128xf32>
    %12 = arith.mulf %8, %11 : vector<8x8x128xf32>
    %cst_8 = arith.constant dense<0.000000e+00> : vector<8x8xf32>
    %13 = vector.multi_reduction <add>, %12, %cst_8 [2] : vector<8x8x128xf32> to vector<8x8xf32>
    %cst_9 = arith.constant dense<0xFF800000> : vector<8xf32>
    %14 = vector.multi_reduction <maximumf>, %13, %cst_9 [1] : vector<8x8xf32> to vector<8xf32>
    %15 = vector.shape_cast %14 : vector<8xf32> to vector<8x1xf32>
    %16 = vector.broadcast %15 : vector<8x1xf32> to vector<8x8xf32>
    %17 = arith.subf %13, %16 : vector<8x8xf32>
    %18 = math.exp %17 : vector<8x8xf32>
    %cst_10 = arith.constant dense<0.000000e+00> : vector<8xf32>
    %19 = vector.multi_reduction <add>, %18, %cst_10 [1] : vector<8x8xf32> to vector<8xf32>
    %20 = vector.shape_cast %19 : vector<8xf32> to vector<8x1xf32>
    %21 = tpu.reciprocal %20 : vector<8x1xf32> -> vector<8x1xf32>
    %22 = vector.broadcast %21 : vector<8x1xf32> to vector<8x8xf32>
    %23 = arith.mulf %18, %22 : vector<8x8xf32>
    %24 = vector.shape_cast %23 : vector<8x8xf32> to vector<8x8x1xf32>
    %25 = vector.broadcast %24 : vector<8x8x1xf32> to vector<8x8x128xf32>
    %26 = arith.mulf %25, %0 : vector<8x8x128xf32>
    %cst_11 = arith.constant dense<0.000000e+00> : vector<8x128xf32>
    %27 = vector.multi_reduction <add>, %26, %cst_11 [1] : vector<8x8x128xf32> to vector<8x128xf32>
    %c0_12 = arith.constant 0 : index
    %c0_13 = arith.constant 0 : index
    %28 = vector.load %arg5[%c0_12, %c0_13] : memref<8x128xf32, #tpu.memory_space<vmem>>, vector<8x128xf32>
    tpu.vector_store %arg5[%c0_12, %c0_13], %27 {strides = array<i32>} : memref<8x128xf32, #tpu.memory_space<vmem>>, vector<8x128xf32>,
    return
  }
  func.func @transform_0(%arg0: i32) -> (i32, i32, i32) {
    %c0_i32 = arith.constant 0 : i32
    %c0_i32_0 = arith.constant 0 : i32
    %c0_i32_1 = arith.constant 0 : i32
    return %arg0, %c0_i32, %c0_i32_0 : i32, i32, i32
  }
  func.func @transform_1(%arg0: i32) -> (i32, i32) {
    %c0_i32 = arith.constant 0 : i32
    %c0_i32_0 = arith.constant 0 : i32
    %c0_i32_1 = arith.constant 0 : i32
    return %c0_i32, %c0_i32_0 : i32, i32
  }
  func.func @transform_2(%arg0: i32) -> (i32, i32) {
    %c0_i32 = arith.constant 0 : i32
    %c0_i32_0 = arith.constant 0 : i32
    %c0_i32_1 = arith.constant 0 : i32
    return %c0_i32, %c0_i32_0 : i32, i32
  }
  func.func @transform_3(%arg0: i32) -> (i32, i32) {
    %c0_i32 = arith.constant 0 : i32
    %c0_i32_0 = arith.constant 0 : i32
    %c0_i32_1 = arith.constant 0 : i32
    return %c0_i32, %c0_i32_0 : i32, i32
  }
  func.func @transform_4(%arg0: i32) -> (i32, i32) {
    %c0_i32 = arith.constant 0 : i32
    %c0_i32_0 = arith.constant 0 : i32
    return %arg0, %c0_i32 : i32, i32
  }
}

</mosaic_0001>

<llo_original>
// kernel: tpu_custom_call.1
$region0: #{tpu_custom_call.1}
  #allocation0 [shape = 'u32[]', space=smem, size = 0x4, offset = 0x4, fixed_abs, tag = 'smem constant byte address 0x4 - core index']
  #allocation1 [shape = 'u32[72,128]{1,0:T(1,128)}', space=vmem, size = 0x9000, scoped, tag = 'internal scratch']
  %s0 = inlined_call_operand.hbm [shape: f32[8,8,128], index: 0, kind: input, shape index: {}]
  %s1 = inlined_call_operand.hbm [shape: f32[128,128], index: 1, kind: input, shape index: {}]
  %s2 = inlined_call_operand.vmem [shape: f32[1,128], index: 2, kind: input, shape index: {}]
  %s3 = inlined_call_operand.vmem [shape: f32[1,128], index: 3, kind: input, shape index: {}]
  %s4 = inlined_call_operand.hbm [shape: f32[8,128], index: 4, kind: output, shape index: {}]
  %s5 = sld [smem:[#allocation0]]
  $region34: #{tpu_custom_call.1} parent=0
    _
  %s7 = ssub.s32 1, %s5
  %s8 = scalar_select 0, %s7, %s5
  $region1: #{tpu_custom_call.1} parent=0
    #allocation2 [shape = 'u8[32768]{0}', space=vmem, size = 0x8000, scoped, tag = 'input window, operand 0, single buffered']
    #allocation3 [shape = 's32[1]{0}', space=sflag, size = 0x4, scoped, tag = 'scoped memory for tpu_custom_call.1']
    #allocation4 [shape = 's32[1]{0}', space=sflag, size = 0x4, scoped, tag = 'scoped memory for tpu_custom_call.1']
    #allocation5 [shape = 'u8[65536]{0}', space=vmem, size = 0x10000, scoped, tag = 'input window, operand 1, single buffered']
    #allocation6 [shape = 's32[1]{0}', space=sflag, size = 0x4, scoped, tag = 'scoped memory for tpu_custom_call.1']
    #allocation7 [shape = 'u8[4096]{0}', space=vmem, size = 0x1000, scoped, tag = 'output window, operand 0, single buffered']
    %9 = vsyncpa [#allocation3], 0
    %10 = vsyncpa [#allocation6], 0
    %11 = vsyncpa [#allocation4], 0
    // Predicated region
    $region2: #{tpu_custom_call.1} parent=1 // pred_check
      _
    $region3: #{tpu_custom_call.1} parent=1 // pred_check_branch
      %13 = sbr.rel (0) target = $region5
    $region4: #{tpu_custom_call.1} parent=1 // pred_region
      %15 = vsyncadd [#allocation3], 0
      %s16 = sshll.u32 %s0, 4
      %s17 = int_to_ptr.hbm [resolvable:$true] %s16
      %s18 = sshll.u32 [#allocation2], 4
      %s19 = int_to_ptr.vmem [resolvable:$true] %s18
      %24 = dma.hbm_to_vmem [thread:$0]  %s17, 1024, %s19, [#allocation3], 128, 128, 8
    $region5: #{tpu_custom_call.1} parent=1 // pred_fallthru
      _
    // Predicated region
    $region6: #{tpu_custom_call.1} parent=1 // pred_check
      _
    $region7: #{tpu_custom_call.1} parent=1 // pred_check_branch
      %26 = sbr.rel (0) target = $region9
    $region8: #{tpu_custom_call.1} parent=1 // pred_region
      %28 = vsyncadd [#allocation6], 0
      %s29 = sshll.u32 %s1, 4
      %s30 = int_to_ptr.hbm [resolvable:$true] %s29
      %s31 = sshll.u32 [#allocation5], 4
      %s32 = int_to_ptr.vmem [resolvable:$true] %s31
      %37 = dma.hbm_to_vmem [thread:$0]  %s30, 2048, %s32, [#allocation6], 128, 128, 8
    $region9: #{tpu_custom_call.1} parent=1 // pred_fallthru
      _
    // Predicated region
    $region10: #{tpu_custom_call.1} parent=1 // pred_check
      _
    $region11: #{tpu_custom_call.1} parent=1 // pred_check_branch
      %39 = sbr.rel (0) target = $region13
    $region12: #{tpu_custom_call.1} parent=1 // pred_region
      _
    $region13: #{tpu_custom_call.1} parent=1 // pred_fallthru
      _
    // Predicated region
    $region14: #{tpu_custom_call.1} parent=1 // pred_check
      _
    $region15: #{tpu_custom_call.1} parent=1 // pred_check_branch
      %41 = sbr.rel (0) target = $region17
    $region16: #{tpu_custom_call.1} parent=1 // pred_region
      _
    $region17: #{tpu_custom_call.1} parent=1 // pred_fallthru
      _
    // Predicated region
    $region18: #{tpu_custom_call.1} parent=1 // pred_check
      _
    $region19: #{tpu_custom_call.1} parent=1 // pred_check_branch
      %43 = sbr.rel (0) target = $region21
    $region20: #{tpu_custom_call.1} parent=1 // pred_region
      %45 = dma.done [#allocation3], 1024
    $region21: #{tpu_custom_call.1} parent=1 // pred_fallthru
      _
    // Predicated region
    $region22: #{tpu_custom_call.1} parent=1 // pred_check
      _
    $region23: #{tpu_custom_call.1} parent=1 // pred_check_branch
      %47 = sbr.rel (0) target = $region25
    $region24: #{tpu_custom_call.1} parent=1 // pred_region
      %49 = dma.done [#allocation6], 2048
    $region25: #{tpu_custom_call.1} parent=1 // pred_fallthru
      _
    %v50 = vld [vmem:[#allocation2] sm:$0xff]
    %v51 = vld [vmem:[#allocation2 + $0x8] sm:$0xff]
    %v52 = vld [vmem:[#allocation2 + $0x10] sm:$0xff]
    %v53 = vld [vmem:[#allocation2 + $0x18] sm:$0xff]
    %v54 = vld [vmem:[#allocation2 + $0x20] sm:$0xff]
    %v55 = vld [vmem:[#allocation2 + $0x28] sm:$0xff]
    %v56 = vld [vmem:[#allocation2 + $0x30] sm:$0xff]
    %v57 = vld [vmem:[#allocation2 + $0x38] sm:$0xff]
    %v58 = vld [vmem:[#allocation5] sm:$0xff]
    %v59 = vld [vmem:[#allocation5 + $0x8] sm:$0xff]
    %v60 = vld [vmem:[#allocation5 + $0x10] sm:$0xff]
    %v61 = vld [vmem:[#allocation5 + $0x18] sm:$0xff]
    %v62 = vld [vmem:[#allocation5 + $0x20] sm:$0xff]
    %v63 = vld [vmem:[#allocation5 + $0x28] sm:$0xff]
    %v64 = vld [vmem:[#allocation5 + $0x30] sm:$0xff]
    %v65 = vld [vmem:[#allocation5 + $0x38] sm:$0xff]
    %v66 = vld [vmem:[#allocation5 + $0x40] sm:$0xff]
    %v67 = vld [vmem:[#allocation5 + $0x48] sm:$0xff]
    %v68 = vld [vmem:[#allocation5 + $0x50] sm:$0xff]
    %v69 = vld [vmem:[#allocation5 + $0x58] sm:$0xff]
    %v70 = vld [vmem:[#allocation5 + $0x60] sm:$0xff]
    %v71 = vld [vmem:[#allocation5 + $0x68] sm:$0xff]
    %v72 = vld [vmem:[#allocation5 + $0x70] sm:$0xff]
    %v73 = vld [vmem:[#allocation5 + $0x78] sm:$0xff]
    %v74 = vld [vmem:[%s2] sm:$0x1]
    %v76 = vperm.slane %v74, 0
    %78 = vmatpush.msra.mxu0 %v73
    %79 = vmatpush.msra.mxu0 %v72
    %80 = vmatpush.msra.mxu0 %v71
    %81 = vmatpush.msra.mxu0 %v70
    %82 = vmatpush.msra.mxu0 %v69
    %83 = vmatpush.msra.mxu0 %v68
    %84 = vmatpush.msra.mxu0 %v67
    %85 = vmatpush.msra.mxu0 %v66
    %86 = vmatpush.msra.mxu0 %v65
    %87 = vmatpush.msra.mxu0 %v64
    %88 = vmatpush.msra.mxu0 %v63
    %89 = vmatpush.msra.mxu0 %v62
    %90 = vmatpush.msra.mxu0 %v61
    %91 = vmatpush.msra.mxu0 %v60
    %92 = vmatpush.msra.mxu0 %v59
    %93 = vmatpush.msra.mxu0 %v58
    %94 = vmatmul.f32.gmra.mxu0 %v50
    %v95 = vpop.f32.mrf.mxu0
    %v96 = vadd.f32 %v76, %v95
    %97 = vmatmul.f32.gmra.mxu0 %v51
    %v98 = vpop.f32.mrf.mxu0
    %v99 = vadd.f32 %v76, %v98
    %100 = vmatmul.f32.gmra.mxu0 %v52
    %v101 = vpop.f32.mrf.mxu0
    %v102 = vadd.f32 %v76, %v101
    %103 = vmatmul.f32.gmra.mxu0 %v53
    %v104 = vpop.f32.mrf.mxu0
    %v105 = vadd.f32 %v76, %v104
    %106 = vmatmul.f32.gmra.mxu0 %v54
    %v107 = vpop.f32.mrf.mxu0
    %v108 = vadd.f32 %v76, %v107
    %109 = vmatmul.f32.gmra.mxu0 %v55
    %v110 = vpop.f32.mrf.mxu0
    %v111 = vadd.f32 %v76, %v110
    %112 = vmatmul.f32.gmra.mxu0 %v56
    %v113 = vpop.f32.mrf.mxu0
    %v114 = vadd.f32 %v76, %v113
    %115 = vmatmul.f32.gmra.mxu0 %v57
    %v116 = vpop.f32.mrf.mxu0
    %v117 = vadd.f32 %v76, %v116
    %118 = vdwg.mxu0
    %v119 = vtanh.pop %v96
    %v120 = vtanh.pop %v99
    %v121 = vtanh.pop %v102
    %v122 = vtanh.pop %v105
    %v123 = vtanh.pop %v108
    %v124 = vtanh.pop %v111
    %v125 = vtanh.pop %v114
    %v126 = vtanh.pop %v117
    %v127 = vld [vmem:[%s3] sm:$0x1]
    %v129 = vperm.slane %v127, 0
    %v131 = vmul.f32 %v119, %v129
    %v132 = vmul.f32 %v120, %v129
    %v133 = vmul.f32 %v121, %v129
    %v134 = vmul.f32 %v122, %v129
    %v135 = vmul.f32 %v123, %v129
    %v136 = vmul.f32 %v124, %v129
    %v137 = vmul.f32 %v125, %v129
    %v138 = vmul.f32 %v126, %v129
    %139 = vadd.xlane.f32.xlu0 %v131
    %v140 = vpop.xlane.xlu0 %139
    %141 = vadd.xlane.f32.xlu0 %v132
    %v142 = vpop.xlane.xlu0 %141
    %143 = vadd.xlane.f32.xlu0 %v133
    %v144 = vpop.xlane.xlu0 %143
    %145 = vadd.xlane.f32.xlu0 %v134
    %v146 = vpop.xlane.xlu0 %145
    %147 = vadd.xlane.f32.xlu0 %v135
    %v148 = vpop.xlane.xlu0 %147
    %149 = vadd.xlane.f32.xlu0 %v136
    %v150 = vpop.xlane.xlu0 %149
    %151 = vadd.xlane.f32.xlu0 %v137
    %v152 = vpop.xlane.xlu0 %151
    %153 = vadd.xlane.f32.xlu0 %v138
    %v154 = vpop.xlane.xlu0 %153
    %v163 = vlaneseq
    %v164 = vand.u32 %v163, 127
    %v165 = vperm.slane %v140, %v164
    %v166 = vperm.slane %v142, %v164
    %v167 = vperm.slane %v144, %v164
    %v168 = vperm.slane %v146, %v164
    %v169 = vperm.slane %v148, %v164
    %v170 = vperm.slane %v150, %v164
    %v171 = vperm.slane %v152, %v164
    %v172 = vperm.slane %v154, %v164
    %vm173 = vcmask 1041409
    %v174 = vsel %vm173, %v166, %v165
    %vm175 = vcmask 1042434
    %v176 = vsel %vm175, %v167, %v174
    %vm177 = vcmask 1043459
    %v178 = vsel %vm177, %v168, %v176
    %vm179 = vcmask 1044484
    %v180 = vsel %vm179, %v169, %v178
    %vm181 = vcmask 1045509
    %v182 = vsel %vm181, %v170, %v180
    %vm183 = vcmask 1046534
    %v184 = vsel %vm183, %v171, %v182
    %vm185 = vcmask 1047559
    %v186 = vsel %vm185, %v172, %v184
    %vm188 = vcmask 64512
    %v189 = vsel %vm188, %v186, -inf
    %190 = vmax.xlane.f32.xlu0 %v189
    %v191 = vpop.xlane.xlu0 %190
    %v193 = vperm.slane %v191, 0
    %v194 = vperm.slane %v191, 1
    %v195 = vperm.slane %v191, 2
    %v196 = vperm.slane %v191, 3
    %v197 = vperm.slane %v191, 4
    %v198 = vperm.slane %v191, 5
    %v199 = vperm.slane %v191, 6
    %v200 = vperm.slane %v191, 7
    %v209 = vsub.f32 %v140, %v193
    %v210 = vsub.f32 %v142, %v194
    %v211 = vsub.f32 %v144, %v195
    %v212 = vsub.f32 %v146, %v196
    %v213 = vsub.f32 %v148, %v197
    %v214 = vsub.f32 %v150, %v198
    %v215 = vsub.f32 %v152, %v199
    %v216 = vsub.f32 %v154, %v200
    %v217 = vmul.f32 %v209, 1.442695
    %v218 = vpow.pop %v217
    %v219 = vmul.f32 %v210, 1.442695
    %v220 = vpow.pop %v219
    %v221 = vmul.f32 %v211, 1.442695
    %v222 = vpow.pop %v221
    %v223 = vmul.f32 %v212, 1.442695
    %v224 = vpow.pop %v223
    %v225 = vmul.f32 %v213, 1.442695
    %v226 = vpow.pop %v225
    %v227 = vmul.f32 %v214, 1.442695
    %v228 = vpow.pop %v227
    %v229 = vmul.f32 %v215, 1.442695
    %v230 = vpow.pop %v229
    %v231 = vmul.f32 %v216, 1.442695
    %v232 = vpow.pop %v231
    %241 = vset.pattern.permute.xlu0 0
    %242 = vperm.xlu0 %241, %v218
    %v243 = vpop.permute.xlu0 %242
    %244 = vset.pattern.permute.xlu0 0
    %245 = vperm.xlu0 %244, %v220
    %v246 = vpop.permute.xlu0 %245
    %247 = vset.pattern.permute.xlu0 0
    %248 = vperm.xlu0 %247, %v222
    %v249 = vpop.permute.xlu0 %248
    %250 = vset.pattern.permute.xlu0 0
    %251 = vperm.xlu0 %250, %v224
    %v252 = vpop.permute.xlu0 %251
    %253 = vset.pattern.permute.xlu0 0
    %254 = vperm.xlu0 %253, %v226
    %v255 = vpop.permute.xlu0 %254
    %256 = vset.pattern.permute.xlu0 0
    %257 = vperm.xlu0 %256, %v228
    %v258 = vpop.permute.xlu0 %257
    %259 = vset.pattern.permute.xlu0 0
    %260 = vperm.xlu0 %259, %v230
    %v261 = vpop.permute.xlu0 %260
    %262 = vset.pattern.permute.xlu0 0
    %263 = vperm.xlu0 %262, %v232
    %v264 = vpop.permute.xlu0 %263
    %v265 = vperm.slane %v243, %v164
    %v266 = vperm.slane %v246, %v164
    %v267 = vperm.slane %v249, %v164
    %v268 = vperm.slane %v252, %v164
    %v269 = vperm.slane %v255, %v164
    %v270 = vperm.slane %v258, %v164
    %v271 = vperm.slane %v261, %v164
    %v272 = vperm.slane %v264, %v164
    %v273 = vsel %vm173, %v266, %v265
    %v274 = vsel %vm175, %v267, %v273
    %v275 = vsel %vm177, %v268, %v274
    %v276 = vsel %vm179, %v269, %v275
    %v277 = vsel %vm181, %v270, %v276
    %v278 = vsel %vm183, %v271, %v277
    %v279 = vsel %vm185, %v272, %v278
    %v281 = vsel %vm188, %v279, 0.0
    %282 = vadd.xlane.f32.xlu0 %v281
    %v283 = vpop.xlane.xlu0 %282
    %v284 = vrcp.pop %v283
    %v285 = vmul.f32 %v283, %v284
    %v286 = vsub.f32 1.0, %v285
    %v287 = vmul.f32 %v284, %v286
    %v288 = vadd.f32 %v284, %v287
    %vm289 = vweird.f32 %v283
    %vm290 = vweird.f32 %v284
    %vm291 = vmor %vm289, %vm290
    %v292 = vsel %vm291, %v284, %v288
    %v293 = vand.u32 2147483647, %v283
    %vm294 = vcmp.eq.f32.partialorder %v293, 8.507059e+37
    %v295 = vand.u32 %v283, 2147483648
    %v296 = vor.u32 1.1754944e-38, %v295
    %v297 = vsel %vm294, %v296, %v292
    %v299 = vperm.slane %v297, 0
    %v300 = vperm.slane %v297, 1
    %v301 = vperm.slane %v297, 2
    %v302 = vperm.slane %v297, 3
    %v303 = vperm.slane %v297, 4
    %v304 = vperm.slane %v297, 5
    %v305 = vperm.slane %v297, 6
    %v306 = vperm.slane %v297, 7
    %v315 = vmul.f32 %v218, %v299
    %v316 = vmul.f32 %v220, %v300
    %v317 = vmul.f32 %v222, %v301
    %v318 = vmul.f32 %v224, %v302
    %v319 = vmul.f32 %v226, %v303
    %v320 = vmul.f32 %v228, %v304
    %v321 = vmul.f32 %v230, %v305
    %v322 = vmul.f32 %v232, %v306
    %324 = vset.pattern.permute.xlu0 0
    %325 = vperm.xlu0 %324, %v315
    %v326 = vpop.permute.xlu0 %325
    %329 = vset.pattern.permute.xlu0 0
    %330 = vperm.xlu0 %329, %v316
    %v331 = vpop.permute.xlu0 %330
    %334 = vset.pattern.permute.xlu0 0
    %335 = vperm.xlu0 %334, %v317
    %v336 = vpop.permute.xlu0 %335
    %339 = vset.pattern.permute.xlu0 0
    %340 = vperm.xlu0 %339, %v318
    %v341 = vpop.permute.xlu0 %340
    %344 = vset.pattern.permute.xlu0 0
    %345 = vperm.xlu0 %344, %v319
    %v346 = vpop.permute.xlu0 %345
    %349 = vset.pattern.permute.xlu0 0
    %350 = vperm.xlu0 %349, %v320
    %v351 = vpop.permute.xlu0 %350
    %354 = vset.pattern.permute.xlu0 0
    %355 = vperm.xlu0 %354, %v321
    %v356 = vpop.permute.xlu0 %355
    %359 = vset.pattern.permute.xlu0 0
    %360 = vperm.xlu0 %359, %v322
    %v361 = vpop.permute.xlu0 %360
    %v363 = vmul.f32 %v326, %v50
    %v364 = vmul.f32 %v331, %v51
    %v365 = vmul.f32 %v336, %v52
    %v366 = vmul.f32 %v341, %v53
    %v367 = vmul.f32 %v346, %v54
    %v368 = vmul.f32 %v351, %v55
    %v369 = vmul.f32 %v356, %v56
    %v370 = vmul.f32 %v361, %v57
    %v371 = vrot.slane %v363, 4
    %v372 = vadd.f32 %v363, %v371
    %v373 = vrot.slane %v372, 2
    %v374 = vadd.f32 %v372, %v373
    %v375 = vrot.slane %v374, 1
    %v376 = vadd.f32 %v374, %v375
    %v377 = vrot.slane %v364, 4
    %v378 = vadd.f32 %v364, %v377
    %v379 = vrot.slane %v378, 2
    %v380 = vadd.f32 %v378, %v379
    %v381 = vrot.slane %v380, 1
    %v382 = vadd.f32 %v380, %v381
    %v383 = vrot.slane %v365, 4
    %v384 = vadd.f32 %v365, %v383
    %v385 = vrot.slane %v384, 2
    %v386 = vadd.f32 %v384, %v385
    %v387 = vrot.slane %v386, 1
    %v388 = vadd.f32 %v386, %v387
    %v389 = vrot.slane %v366, 4
    %v390 = vadd.f32 %v366, %v389
    %v391 = vrot.slane %v390, 2
    %v392 = vadd.f32 %v390, %v391
    %v393 = vrot.slane %v392, 1
    %v394 = vadd.f32 %v392, %v393
    %v395 = vrot.slane %v367, 4
    %v396 = vadd.f32 %v367, %v395
    %v397 = vrot.slane %v396, 2
    %v398 = vadd.f32 %v396, %v397
    %v399 = vrot.slane %v398, 1
    %v400 = vadd.f32 %v398, %v399
    %v401 = vrot.slane %v368, 4
    %v402 = vadd.f32 %v368, %v401
    %v403 = vrot.slane %v402, 2
    %v404 = vadd.f32 %v402, %v403
    %v405 = vrot.slane %v404, 1
    %v406 = vadd.f32 %v404, %v405
    %v407 = vrot.slane %v369, 4
    %v408 = vadd.f32 %v369, %v407
    %v409 = vrot.slane %v408, 2
    %v410 = vadd.f32 %v408, %v409
    %v411 = vrot.slane %v410, 1
    %v412 = vadd.f32 %v410, %v411
    %v413 = vrot.slane %v370, 4
    %v414 = vadd.f32 %v370, %v413
    %v415 = vrot.slane %v414, 2
    %v416 = vadd.f32 %v414, %v415
    %v417 = vrot.slane %v416, 1
    %v418 = vadd.f32 %v416, %v417
    %v427 = vsel %vm173, %v382, %v376
    %v428 = vsel %vm175, %v388, %v427
    %v429 = vsel %vm177, %v394, %v428
    %v430 = vsel %vm179, %v400, %v429
    %v431 = vsel %vm181, %v406, %v430
    %v432 = vsel %vm183, %v412, %v431
    %v433 = vsel %vm185, %v418, %v432
    %435 = vst [vmem:[#allocation7] sm:$0xff] %v433
    // Predicated region
    $region26: #{tpu_custom_call.1} parent=1 // pred_check
      _
    $region27: #{tpu_custom_call.1} parent=1 // pred_check_branch
      %437 = sbr.rel (0) target = $region29
    $region28: #{tpu_custom_call.1} parent=1 // pred_region
      %439 = vsyncadd [#allocation4], 0
      %s441 = sshll.u32 [#allocation7], 4
      %s442 = int_to_ptr.vmem [resolvable:$true] %s441
      %s443 = sshll.u32 %s4, 4
      %s444 = int_to_ptr.hbm [resolvable:$true] %s443
      %446 = dma.vmem_to_hbm [thread:$0]  %s442, 128, %s444, [#allocation4]
    $region29: #{tpu_custom_call.1} parent=1 // pred_fallthru
      _
    // Predicated region
    $region30: #{tpu_custom_call.1} parent=1 // pred_check
      _
    $region31: #{tpu_custom_call.1} parent=1 // pred_check_branch
      %448 = sbr.rel (0) target = $region33
    $region32: #{tpu_custom_call.1} parent=1 // pred_region
      %450 = dma.done [#allocation4], 128
    $region33: #{tpu_custom_call.1} parent=1 // pred_fallthru
      _
    %451 = vsyncpa [#allocation3], 1
    %452 = vsyncpa [#allocation6], 1
    %453 = vsyncpa [#allocation4], 1

</llo_original>
